<compile_context>
chip_gen: v6e
topology: v6e:2x2x1
jax: 0.10.0
libtpu: 0.0.40
codegen_flags: <defaults>
</compile_context>

<pallas_src>
import jax
import jax.numpy as jnp
from jax.experimental import pallas as pl
from jax.experimental.pallas import tpu as pltpu

NEG_SLOPE = 0.01  # nn.LeakyReLU default
H1, H2 = 150, 50  # hidden sizes fixed by the module


def _leaky_relu(x):
    return jnp.where(x > 0, x, NEG_SLOPE * x)


def cls_head_kernel(x_ref, w1_ref, b1_ref, w2_ref, b2_ref, w3_ref, b3_ref,
                    o_ref, acc_ref):
    # Grid: (batch tiles [parallel], K tiles over input_dim [arbitrary]).
    # x_ref: [TB, TK] f32     w1: [TK, 150] bf16    b1: [1, 150] f32
    # w2:    [150, 50] bf16   b2: [1, 50]  f32
    # w3:    [50, C]  bf16    b3: [1, C]   f32
    k = pl.program_id(1)

    @pl.when(k == 0)
    def _():
        acc_ref[...] = jnp.zeros_like(acc_ref)

    # First matmul: accumulate x-tile @ w1-tile across K steps.  bf16 weights
    # are upcast in-register; the VPU cast is free filler in this mem-bound
    # regime while halving the HBM traffic that actually binds.
    x = x_ref[...]
    w1 = w1_ref[...].astype(jnp.float32)
    acc_ref[...] += jnp.dot(x, w1, preferred_element_type=jnp.float32)

    @pl.when(k == pl.num_programs(1) - 1)
    def _():
        h1 = _leaky_relu(acc_ref[...] + b1_ref[...])
        # Dropout (p=dropout_prob) is identity at inference time.
        w2 = w2_ref[...].astype(jnp.float32)
        h2 = _leaky_relu(jnp.dot(h1, w2, preferred_element_type=jnp.float32)
                         + b2_ref[...])
        w3 = w3_ref[...].astype(jnp.float32)
        out = jnp.dot(h2, w3, preferred_element_type=jnp.float32) + b3_ref[...]
        o_ref[...] = out.astype(o_ref.dtype)


def classification_head(x_nchw, params, *, batch_tile=256, k_tile=1024):
    """x_nchw: [B, C, H, W] float32. Returns logits [B, num_classes] float32."""
    w1, b1, w2, b2, w3, b3 = params
    B = x_nchw.shape[0]
    input_dim = int(x_nchw.shape[1] * x_nchw.shape[2] * x_nchw.shape[3])
    num_classes = int(w3.shape[1])

    # nn.Flatten(): row-major flatten of all non-batch dims.
    x_flat = x_nchw.reshape(B, input_dim)

    # bf16 weights at the call boundary (dominant HBM bytes halved).
    w1b = w1.astype(jnp.bfloat16)
    w2b = w2.astype(jnp.bfloat16)
    w3b = w3.astype(jnp.bfloat16)

    # Tile choices.
    tb = B if B <= batch_tile else batch_tile
    if input_dim <= k_tile:
        tk = input_dim
    else:
        tk = k_tile
        # Zero-pad K to a multiple of tk (zeros contribute nothing to the dot)
        # so every K block is aligned and fully defined.
        pad = (-input_dim) % tk
        if pad:
            x_flat = jnp.pad(x_flat, ((0, 0), (0, pad)))
            w1b = jnp.pad(w1b, ((0, pad), (0, 0)))
    k_padded = x_flat.shape[1]
    grid = (pl.cdiv(B, tb), k_padded // tk)

    cost = pl.CostEstimate(
        flops=2 * B * (input_dim * H1 + H1 * H2 + H2 * num_classes),
        transcendentals=0,
        bytes_accessed=(x_flat.size * 4
                        + w1b.size * 2 + w2b.size * 2 + w3b.size * 2
                        + b1.size * 4 + b2.size * 4 + b3.size * 4
                        + B * num_classes * 4),
    )

    out = pl.pallas_call(
        cls_head_kernel,
        out_shape=jax.ShapeDtypeStruct((B, num_classes), jnp.float32),
        grid_spec=pltpu.PrefetchScalarGridSpec(
            num_scalar_prefetch=0,
            grid=grid,
            in_specs=[
                pl.BlockSpec((tb, tk), lambda i, k: (i, k)),            # x
                pl.BlockSpec((tk, H1), lambda i, k: (k, 0)),            # w1
                pl.BlockSpec((1, H1), lambda i, k: (0, 0)),             # b1
                pl.BlockSpec((H1, H2), lambda i, k: (0, 0)),            # w2
                pl.BlockSpec((1, H2), lambda i, k: (0, 0)),             # b2
                pl.BlockSpec((H2, num_classes), lambda i, k: (0, 0)),   # w3
                pl.BlockSpec((1, num_classes), lambda i, k: (0, 0)),    # b3
            ],
            out_specs=pl.BlockSpec((tb, num_classes), lambda i, k: (i, 0)),
            scratch_shapes=[pltpu.VMEM((tb, H1), jnp.float32)],
        ),
        compiler_params=pltpu.CompilerParams(
            dimension_semantics=("parallel", "arbitrary"),
            vmem_limit_bytes=32 * 1024 * 1024,
        ),
        cost_estimate=cost,
    )(x_flat, w1b, b1, w2b, b2, w3b, b3)
    return out


def init_params(key, input_dim, num_classes):
    """Deterministic synthetic init matching the module's parameter shapes.

    Weights are stored transposed relative to PyTorch (in_features, out_features)
    so the kernel computes x @ W + b directly.
    """
    k1, k2, k3, k4, k5, k6 = jax.random.split(key, 6)

    def lin(kw, kb, fan_in, fan_out):
        bound = 1.0 / jnp.sqrt(fan_in)
        w = jax.random.uniform(kw, (fan_in, fan_out), jnp.float32, -bound, bound)
        b = jax.random.uniform(kb, (1, fan_out), jnp.float32, -bound, bound)
        return w, b

    w1, b1 = lin(k1, k2, input_dim, H1)
    w2, b2 = lin(k3, k4, H1, H2)
    w3, b3 = lin(k5, k6, H2, num_classes)
    return (w1, b1, w2, b2, w3, b3)


def reference_forward(x_nchw, params):
    """Pure-JAX f32 reference for correctness checking."""
    w1, b1, w2, b2, w3, b3 = params
    B = x_nchw.shape[0]
    x = x_nchw.reshape(B, -1)
    h1 = _leaky_relu(x @ w1 + b1)
    h2 = _leaky_relu(h1 @ w2 + b2)
    return h2 @ w3 + b3


if __name__ == "__main__":
    key = jax.random.PRNGKey(0)
    kx, kp = jax.random.split(key)

    # Small shapes: batch=2, channels=4, spatial=16x16 -> input_dim = 1024
    B, C, H, W = 2, 4, 16, 16
    input_dim = C * H * W
    num_classes = 10

    x = jax.random.normal(kx, (B, C, H, W), jnp.float32)
    params = init_params(kp, input_dim, num_classes)

    out = classification_head(x, params)
    out = jax.block_until_ready(out)

    ref = reference_forward(x, params)
    assert out.shape == (B, num_classes), out.shape
    # bf16 weights => loosened tolerance vs the f32 reference.
    assert jnp.allclose(out, ref, atol=3e-2, rtol=3e-2), "mismatch vs reference"

    print("KERNEL_OK")
</pallas_src>

<mosaic_0001>
module attributes {stable_mosaic.version = 11 : i64} {
  func.func @cls_head_kernel(%arg0: i32, %arg1: i32, %arg2: memref<2x1024xf32, #tpu.memory_space<vmem>>, %arg3: memref<1024x150xbf16, #tpu.memory_space<vmem>>, %arg4: memref<1x150xf32, #tpu.memory_space<vmem>>, %arg5: memref<150x50xbf16, #tpu.memory_space<vmem>>, %arg6: memref<1x50xf32, #tpu.memory_space<vmem>>, %arg7: memref<50x10xbf16, #tpu.memory_space<vmem>>, %arg8: memref<1x10xf32, #tpu.memory_space<vmem>>, %arg9: memref<2x10xf32, #tpu.memory_space<vmem>>, %arg10: memref<2x150xf32, #tpu.memory_space<vmem>>) attributes {dimension_semantics = [#tpu.dimension_semantics<parallel>, #tpu.dimension_semantics<arbitrary>], iteration_bounds = array<i64: 1, 1>, scalar_prefetch = 0 : i64, scratch_operands = 1 : i64, tpu.core_type = #tpu.core_type<tc>, window_params = [{transform_indices = @transform_0, window_bounds = array<i64: 2, 1024>}, {transform_indices = @transform_1, window_bounds = array<i64: 1024, 150>}, {pipeline_mode = #tpu.pipeline_mode<synchronous>, transform_indices = @transform_2, window_bounds = array<i64: 1, 150>}, {pipeline_mode = #tpu.pipeline_mode<synchronous>, transform_indices = @transform_3, window_bounds = array<i64: 150, 50>}, {pipeline_mode = #tpu.pipeline_mode<synchronous>, transform_indices = @transform_4, window_bounds = array<i64: 1, 50>}, {pipeline_mode = #tpu.pipeline_mode<synchronous>, transform_indices = @transform_5, window_bounds = array<i64: 50, 10>}, {pipeline_mode = #tpu.pipeline_mode<synchronous>, transform_indices = @transform_6, window_bounds = array<i64: 1, 10>}, {transform_indices = @transform_7, window_bounds = array<i64: 2, 10>}]} {
    %c0_i32 = arith.constant 0 : i32
    %0 = arith.cmpi eq, %arg1, %c0_i32 : i32
    %1 = arith.extui %0 : i1 to i32
    %c0_i32_0 = arith.constant 0 : i32
    %2 = arith.cmpi ne, %1, %c0_i32_0 : i32
    scf.if %2 {
      %cst_10 = arith.constant 0.000000e+00 : f32
      %13 = vector.broadcast %cst_10 : f32 to vector<2x150xf32>
      %c0_11 = arith.constant 0 : index
      %c0_12 = arith.constant 0 : index
      %14 = vector.load %arg10[%c0_11, %c0_12] : memref<2x150xf32, #tpu.memory_space<vmem>>, vector<2x150xf32>
      tpu.vector_store %arg10[%c0_11, %c0_12], %13 {strides = array<i32>} : memref<2x150xf32, #tpu.memory_space<vmem>>, vector<2x150xf32>,
    } else {
    }
    %c0 = arith.constant 0 : index
    %c0_1 = arith.constant 0 : index
    %3 = vector.load %arg2[%c0, %c0_1] : memref<2x1024xf32, #tpu.memory_space<vmem>>, vector<2x1024xf32>
    %c0_2 = arith.constant 0 : index
    %c0_3 = arith.constant 0 : index
    %4 = vector.load %arg3[%c0_2, %c0_3] : memref<1024x150xbf16, #tpu.memory_space<vmem>>, vector<1024x150xbf16>
    %5 = arith.extf %4 : vector<1024x150xbf16> to vector<1024x150xf32>
    %c0_4 = arith.constant 0 : index
    %c0_5 = arith.constant 0 : index
    %6 = vector.load %arg10[%c0_4, %c0_5] : memref<2x150xf32, #tpu.memory_space<vmem>>, vector<2x150xf32>
    %cst = arith.constant dense<0.000000e+00> : vector<2x150xf32>
    %7 = tpu.matmul %3, %5, %cst {dimension_numbers = #tpu.dot_dimension_numbers<[1], [0], [0], [1], [0, 0, 1, 1], [], []>} : vector<2x1024xf32>, vector<1024x150xf32>, vector<2x150xf32> -> vector<2x150xf32>
    %8 = arith.addf %6, %7 : vector<2x150xf32>
    %c0_6 = arith.constant 0 : index
    %c0_7 = arith.constant 0 : index
    %9 = vector.load %arg10[%c0_6, %c0_7] : memref<2x150xf32, #tpu.memory_space<vmem>>, vector<2x150xf32>
    tpu.vector_store %arg10[%c0_6, %c0_7], %8 {strides = array<i32>} : memref<2x150xf32, #tpu.memory_space<vmem>>, vector<2x150xf32>,
    %c0_i32_8 = arith.constant 0 : i32
    %10 = arith.cmpi eq, %arg1, %c0_i32_8 : i32
    %11 = arith.extui %10 : i1 to i32
    %c0_i32_9 = arith.constant 0 : i32
    %12 = arith.cmpi ne, %11, %c0_i32_9 : i32
    scf.if %12 {
      %c0_10 = arith.constant 0 : index
      %c0_11 = arith.constant 0 : index
      %13 = vector.load %arg10[%c0_10, %c0_11] : memref<2x150xf32, #tpu.memory_space<vmem>>, vector<2x150xf32>
      %c0_12 = arith.constant 0 : index
      %c0_13 = arith.constant 0 : index
      %14 = vector.load %arg4[%c0_12, %c0_13] : memref<1x150xf32, #tpu.memory_space<vmem>>, vector<1x150xf32>
      %15 = vector.broadcast %14 : vector<1x150xf32> to vector<2x150xf32>
      %16 = arith.addf %13, %15 : vector<2x150xf32>
      %cst_14 = arith.constant 0.000000e+00 : f32
      %17 = vector.broadcast %cst_14 : f32 to vector<2x150xf32>
      %18 = arith.cmpf ogt, %16, %17 : vector<2x150xf32>
      %cst_15 = arith.constant 0.00999999977 : f32
      %19 = vector.broadcast %cst_15 : f32 to vector<2x150xf32>
      %20 = arith.mulf %19, %16 : vector<2x150xf32>
      %21 = arith.select %18, %16, %20 : vector<2x150xi1>, vector<2x150xf32>
      %c0_16 = arith.constant 0 : index
      %c0_17 = arith.constant 0 : index
      %22 = vector.load %arg5[%c0_16, %c0_17] : memref<150x50xbf16, #tpu.memory_space<vmem>>, vector<150x50xbf16>
      %23 = arith.extf %22 : vector<150x50xbf16> to vector<150x50xf32>
      %cst_18 = arith.constant dense<0.000000e+00> : vector<2x50xf32>
      %24 = tpu.matmul %21, %23, %cst_18 {dimension_numbers = #tpu.dot_dimension_numbers<[1], [0], [0], [1], [0, 0, 1, 1], [], []>} : vector<2x150xf32>, vector<150x50xf32>, vector<2x50xf32> -> vector<2x50xf32>
      %c0_19 = arith.constant 0 : index
      %c0_20 = arith.constant 0 : index
      %25 = vector.load %arg6[%c0_19, %c0_20] : memref<1x50xf32, #tpu.memory_space<vmem>>, vector<1x50xf32>
      %26 = vector.broadcast %25 : vector<1x50xf32> to vector<2x50xf32>
      %27 = arith.addf %24, %26 : vector<2x50xf32>
      %cst_21 = arith.constant 0.000000e+00 : f32
      %28 = vector.broadcast %cst_21 : f32 to vector<2x50xf32>
      %29 = arith.cmpf ogt, %27, %28 : vector<2x50xf32>
      %cst_22 = arith.constant 0.00999999977 : f32
      %30 = vector.broadcast %cst_22 : f32 to vector<2x50xf32>
      %31 = arith.mulf %30, %27 : vector<2x50xf32>
      %32 = arith.select %29, %27, %31 : vector<2x50xi1>, vector<2x50xf32>
      %c0_23 = arith.constant 0 : index
      %c0_24 = arith.constant 0 : index
      %33 = vector.load %arg7[%c0_23, %c0_24] : memref<50x10xbf16, #tpu.memory_space<vmem>>, vector<50x10xbf16>
      %34 = arith.extf %33 : vector<50x10xbf16> to vector<50x10xf32>
      %cst_25 = arith.constant dense<0.000000e+00> : vector<2x10xf32>
      %35 = tpu.matmul %32, %34, %cst_25 {dimension_numbers = #tpu.dot_dimension_numbers<[1], [0], [0], [1], [0, 0, 1, 1], [], []>} : vector<2x50xf32>, vector<50x10xf32>, vector<2x10xf32> -> vector<2x10xf32>
      %c0_26 = arith.constant 0 : index
      %c0_27 = arith.constant 0 : index
      %36 = vector.load %arg8[%c0_26, %c0_27] : memref<1x10xf32, #tpu.memory_space<vmem>>, vector<1x10xf32>
      %37 = vector.broadcast %36 : vector<1x10xf32> to vector<2x10xf32>
      %38 = arith.addf %35, %37 : vector<2x10xf32>
      %c0_28 = arith.constant 0 : index
      %c0_29 = arith.constant 0 : index
      %39 = vector.load %arg9[%c0_28, %c0_29] : memref<2x10xf32, #tpu.memory_space<vmem>>, vector<2x10xf32>
      tpu.vector_store %arg9[%c0_28, %c0_29], %38 {strides = array<i32>} : memref<2x10xf32, #tpu.memory_space<vmem>>, vector<2x10xf32>,
    } else {
    }
    return
  }
  func.func @transform_0(%arg0: i32, %arg1: i32) -> (i32, i32) {
    %c0_i32 = arith.constant 0 : i32
    return %arg0, %arg1 : i32, i32
  }
  func.func @transform_1(%arg0: i32, %arg1: i32) -> (i32, i32) {
    %c0_i32 = arith.constant 0 : i32
    %c0_i32_0 = arith.constant 0 : i32
    return %arg1, %c0_i32 : i32, i32
  }
  func.func @transform_2(%arg0: i32, %arg1: i32) -> (i32, i32) {
    %c0_i32 = arith.constant 0 : i32
    %c0_i32_0 = arith.constant 0 : i32
    %c0_i32_1 = arith.constant 0 : i32
    return %c0_i32, %c0_i32_0 : i32, i32
  }
  func.func @transform_3(%arg0: i32, %arg1: i32) -> (i32, i32) {
    %c0_i32 = arith.constant 0 : i32
    %c0_i32_0 = arith.constant 0 : i32
    %c0_i32_1 = arith.constant 0 : i32
    return %c0_i32, %c0_i32_0 : i32, i32
  }
  func.func @transform_4(%arg0: i32, %arg1: i32) -> (i32, i32) {
    %c0_i32 = arith.constant 0 : i32
    %c0_i32_0 = arith.constant 0 : i32
    %c0_i32_1 = arith.constant 0 : i32
    return %c0_i32, %c0_i32_0 : i32, i32
  }
  func.func @transform_5(%arg0: i32, %arg1: i32) -> (i32, i32) {
    %c0_i32 = arith.constant 0 : i32
    %c0_i32_0 = arith.constant 0 : i32
    %c0_i32_1 = arith.constant 0 : i32
    return %c0_i32, %c0_i32_0 : i32, i32
  }
  func.func @transform_6(%arg0: i32, %arg1: i32) -> (i32, i32) {
    %c0_i32 = arith.constant 0 : i32
    %c0_i32_0 = arith.constant 0 : i32
    %c0_i32_1 = arith.constant 0 : i32
    return %c0_i32, %c0_i32_0 : i32, i32
  }
  func.func @transform_7(%arg0: i32, %arg1: i32) -> (i32, i32) {
    %c0_i32 = arith.constant 0 : i32
    %c0_i32_0 = arith.constant 0 : i32
    return %arg0, %c0_i32 : i32, i32
  }
}

</mosaic_0001>

<llo_original>
// kernel: tpu_custom_call.1
$region0: #{tpu_custom_call.1}
  #allocation0 [shape = 'u32[]', space=smem, size = 0x4, offset = 0x4, fixed_abs, tag = 'smem constant byte address 0x4 - core index']
  #allocation1 [shape = 'u32[144,128]{1,0:T(1,128)}', space=vmem, size = 0x12000, scoped, tag = 'internal scratch']
  #allocation2 [shape = 'f32[2,150]{1,0:T(2,128)}', space=vmem, size = 0x800, scoped, tag = 'scratch operand']
  %s0 = inlined_call_operand.vmem [shape: f32[2,1024], index: 0, kind: input, shape index: {}]
  %s1 = inlined_call_operand.vmem [shape: bf16[1024,150], index: 1, kind: input, shape index: {}]
  %s2 = inlined_call_operand.vmem [shape: f32[1,150], index: 2, kind: input, shape index: {}]
  %s3 = inlined_call_operand.vmem [shape: bf16[150,50], index: 3, kind: input, shape index: {}]
  %s4 = inlined_call_operand.vmem [shape: f32[1,50], index: 4, kind: input, shape index: {}]
  %s5 = inlined_call_operand.vmem [shape: bf16[50,10], index: 5, kind: input, shape index: {}]
  %s6 = inlined_call_operand.vmem [shape: f32[1,10], index: 6, kind: input, shape index: {}]
  %s7 = inlined_call_operand.hbm [shape: f32[2,10], index: 7, kind: output, shape index: {}]
  %s8 = sld [smem:[#allocation0]]
  $region46: #{tpu_custom_call.1} parent=0
    _
  %s10 = ssub.s32 1, %s8
  %s11 = scalar_select 0, %s10, %s8
  $region1: #{tpu_custom_call.1} parent=0
    #allocation3 [shape = 'u8[1024]{0}', space=vmem, size = 0x400, scoped, tag = 'output window, operand 0, single buffered']
    #allocation4 [shape = 's32[1]{0}', space=sflag, size = 0x4, scoped, tag = 'scoped memory for tpu_custom_call.1']
    %12 = vsyncpa [#allocation4], 0
    // Predicated region
    $region2: #{tpu_custom_call.1} parent=1 // pred_check
      _
    $region3: #{tpu_custom_call.1} parent=1 // pred_check_branch
      %14 = sbr.rel (0) target = $region5
    $region4: #{tpu_custom_call.1} parent=1 // pred_region
      _
    $region5: #{tpu_custom_call.1} parent=1 // pred_fallthru
      _
    // Predicated region
    $region6: #{tpu_custom_call.1} parent=1 // pred_check
      _
    $region7: #{tpu_custom_call.1} parent=1 // pred_check_branch
      %16 = sbr.rel (0) target = $region9
    $region8: #{tpu_custom_call.1} parent=1 // pred_region
      _
    $region9: #{tpu_custom_call.1} parent=1 // pred_fallthru
      _
    // Predicated region
    $region10: #{tpu_custom_call.1} parent=1 // pred_check
      _
    $region11: #{tpu_custom_call.1} parent=1 // pred_check_branch
      %18 = sbr.rel (0) target = $region13
    $region12: #{tpu_custom_call.1} parent=1 // pred_region
      _
    $region13: #{tpu_custom_call.1} parent=1 // pred_fallthru
      _
    // Predicated region
    $region14: #{tpu_custom_call.1} parent=1 // pred_check
      _
    $region15: #{tpu_custom_call.1} parent=1 // pred_check_branch
      %20 = sbr.rel (0) target = $region17
    $region16: #{tpu_custom_call.1} parent=1 // pred_region
      _
    $region17: #{tpu_custom_call.1} parent=1 // pred_fallthru
      _
    // Predicated region
    $region18: #{tpu_custom_call.1} parent=1 // pred_check
      _
    $region19: #{tpu_custom_call.1} parent=1 // pred_check_branch
      %22 = sbr.rel (0) target = $region21
    $region20: #{tpu_custom_call.1} parent=1 // pred_region
      _
    $region21: #{tpu_custom_call.1} parent=1 // pred_fallthru
      _
    // Predicated region
    $region22: #{tpu_custom_call.1} parent=1 // pred_check
      _
    $region23: #{tpu_custom_call.1} parent=1 // pred_check_branch
      %24 = sbr.rel (0) target = $region25
    $region24: #{tpu_custom_call.1} parent=1 // pred_region
      _
    $region25: #{tpu_custom_call.1} parent=1 // pred_fallthru
      _
    // Predicated region
    $region26: #{tpu_custom_call.1} parent=1 // pred_check
      _
    $region27: #{tpu_custom_call.1} parent=1 // pred_check_branch
      %26 = sbr.rel (0) target = $region29
    $region28: #{tpu_custom_call.1} parent=1 // pred_region
      _
    $region29: #{tpu_custom_call.1} parent=1 // pred_fallthru
      _
    %p27 = scmp.eq.s32.totalorder 0, 0
    // Predicated region
    $region30: #{tpu_custom_call.1} parent=1 // pred_check
      %p28 = pneg %p27
    $region31: #{tpu_custom_call.1} parent=1 // pred_check_branch
      %30 = sbr.rel (%p28) target = $region33
    $region32: #{tpu_custom_call.1} parent=1 // pred_region
      %vm31 = vcmask 1041408
      %vm32 = vcmask 175106
      %vm33 = vmor %vm32, %vm31
      %34 = vst.msk [vmem:[#allocation2] sm:$0xf] %vm33, 0.0
    $region33: #{tpu_custom_call.1} parent=1 // pred_fallthru
      _
    %v35 = vld [vmem:[%s0] sm:$0xff]
    %v36 = vld [vmem:[%s0 + $0x8] sm:$0xff]
    %v37 = vld [vmem:[%s1] sm:$0xff]
    %v38 = vld [vmem:[%s1 + $0x8] sm:$0xff]
    %v39 = vld [vmem:[%s1 + $0x10] sm:$0xff]
    %v40 = vld [vmem:[%s1 + $0x18] sm:$0xff]
    %v41 = vld [vmem:[%s1 + $0x20] sm:$0xff]
    %v42 = vld [vmem:[%s1 + $0x28] sm:$0xff]
    %v43 = vld [vmem:[%s1 + $0x30] sm:$0xff]
    %v44 = vld [vmem:[%s1 + $0x38] sm:$0xff]
    %v45 = vld [vmem:[%s1 + $0x40] sm:$0xff]
    %v46 = vld [vmem:[%s1 + $0x48] sm:$0xff]
    %v47 = vld [vmem:[%s1 + $0x50] sm:$0xff]
    %v48 = vld [vmem:[%s1 + $0x58] sm:$0xff]
    %v49 = vld [vmem:[%s1 + $0x60] sm:$0xff]
    %v50 = vld [vmem:[%s1 + $0x68] sm:$0xff]
    %v51 = vld [vmem:[%s1 + $0x70] sm:$0xff]
    %v52 = vld [vmem:[%s1 + $0x78] sm:$0xff]
    %v53 = vld [vmem:[%s1 + $0x80] sm:$0xff]
    %v54 = vld [vmem:[%s1 + $0x88] sm:$0xff]
    %v55 = vld [vmem:[%s1 + $0x90] sm:$0xff]
    %v56 = vld [vmem:[%s1 + $0x98] sm:$0xff]
    %v57 = vld [vmem:[%s1 + $0xa0] sm:$0xff]
    %v58 = vld [vmem:[%s1 + $0xa8] sm:$0xff]
    %v59 = vld [vmem:[%s1 + $0xb0] sm:$0xff]
    %v60 = vld [vmem:[%s1 + $0xb8] sm:$0xff]
    %v61 = vld [vmem:[%s1 + $0xc0] sm:$0xff]
    %v62 = vld [vmem:[%s1 + $0xc8] sm:$0xff]
    %v63 = vld [vmem:[%s1 + $0xd0] sm:$0xff]
    %v64 = vld [vmem:[%s1 + $0xd8] sm:$0xff]
    %v65 = vld [vmem:[%s1 + $0xe0] sm:$0xff]
    %v66 = vld [vmem:[%s1 + $0xe8] sm:$0xff]
    %v67 = vld [vmem:[%s1 + $0xf0] sm:$0xff]
    %v68 = vld [vmem:[%s1 + $0xf8] sm:$0xff]
    %v69 = vld [vmem:[%s1 + $0x100] sm:$0xff]
    %v70 = vld [vmem:[%s1 + $0x108] sm:$0xff]
    %v71 = vld [vmem:[%s1 + $0x110] sm:$0xff]
    %v72 = vld [vmem:[%s1 + $0x118] sm:$0xff]
    %v73 = vld [vmem:[%s1 + $0x120] sm:$0xff]
    %v74 = vld [vmem:[%s1 + $0x128] sm:$0xff]
    %v75 = vld [vmem:[%s1 + $0x130] sm:$0xff]
    %v76 = vld [vmem:[%s1 + $0x138] sm:$0xff]
    %v77 = vld [vmem:[%s1 + $0x140] sm:$0xff]
    %v78 = vld [vmem:[%s1 + $0x148] sm:$0xff]
    %v79 = vld [vmem:[%s1 + $0x150] sm:$0xff]
    %v80 = vld [vmem:[%s1 + $0x158] sm:$0xff]
    %v81 = vld [vmem:[%s1 + $0x160] sm:$0xff]
    %v82 = vld [vmem:[%s1 + $0x168] sm:$0xff]
    %v83 = vld [vmem:[%s1 + $0x170] sm:$0xff]
    %v84 = vld [vmem:[%s1 + $0x178] sm:$0xff]
    %v85 = vld [vmem:[%s1 + $0x180] sm:$0xff]
    %v86 = vld [vmem:[%s1 + $0x188] sm:$0xff]
    %v87 = vld [vmem:[%s1 + $0x190] sm:$0xff]
    %v88 = vld [vmem:[%s1 + $0x198] sm:$0xff]
    %v89 = vld [vmem:[%s1 + $0x1a0] sm:$0xff]
    %v90 = vld [vmem:[%s1 + $0x1a8] sm:$0xff]
    %v91 = vld [vmem:[%s1 + $0x1b0] sm:$0xff]
    %v92 = vld [vmem:[%s1 + $0x1b8] sm:$0xff]
    %v93 = vld [vmem:[%s1 + $0x1c0] sm:$0xff]
    %v94 = vld [vmem:[%s1 + $0x1c8] sm:$0xff]
    %v95 = vld [vmem:[%s1 + $0x1d0] sm:$0xff]
    %v96 = vld [vmem:[%s1 + $0x1d8] sm:$0xff]
    %v97 = vld [vmem:[%s1 + $0x1e0] sm:$0xff]
    %v98 = vld [vmem:[%s1 + $0x1e8] sm:$0xff]
    %v99 = vld [vmem:[%s1 + $0x1f0] sm:$0xff]
    %v100 = vld [vmem:[%s1 + $0x1f8] sm:$0xff]
    %v101 = vld [vmem:[%s1 + $0x200] sm:$0xff]
    %v102 = vld [vmem:[%s1 + $0x208] sm:$0xff]
    %v103 = vld [vmem:[%s1 + $0x210] sm:$0xff]
    %v104 = vld [vmem:[%s1 + $0x218] sm:$0xff]
    %v105 = vld [vmem:[%s1 + $0x220] sm:$0xff]
    %v106 = vld [vmem:[%s1 + $0x228] sm:$0xff]
    %v107 = vld [vmem:[%s1 + $0x230] sm:$0xff]
    %v108 = vld [vmem:[%s1 + $0x238] sm:$0xff]
    %v109 = vld [vmem:[%s1 + $0x240] sm:$0xff]
    %v110 = vld [vmem:[%s1 + $0x248] sm:$0xff]
    %v111 = vld [vmem:[%s1 + $0x250] sm:$0xff]
    %v112 = vld [vmem:[%s1 + $0x258] sm:$0xff]
    %v113 = vld [vmem:[%s1 + $0x260] sm:$0xff]
    %v114 = vld [vmem:[%s1 + $0x268] sm:$0xff]
    %v115 = vld [vmem:[%s1 + $0x270] sm:$0xff]
    %v116 = vld [vmem:[%s1 + $0x278] sm:$0xff]
    %v117 = vld [vmem:[%s1 + $0x280] sm:$0xff]
    %v118 = vld [vmem:[%s1 + $0x288] sm:$0xff]
    %v119 = vld [vmem:[%s1 + $0x290] sm:$0xff]
    %v120 = vld [vmem:[%s1 + $0x298] sm:$0xff]
    %v121 = vld [vmem:[%s1 + $0x2a0] sm:$0xff]
    %v122 = vld [vmem:[%s1 + $0x2a8] sm:$0xff]
    %v123 = vld [vmem:[%s1 + $0x2b0] sm:$0xff]
    %v124 = vld [vmem:[%s1 + $0x2b8] sm:$0xff]
    %v125 = vld [vmem:[%s1 + $0x2c0] sm:$0xff]
    %v126 = vld [vmem:[%s1 + $0x2c8] sm:$0xff]
    %v127 = vld [vmem:[%s1 + $0x2d0] sm:$0xff]
    %v128 = vld [vmem:[%s1 + $0x2d8] sm:$0xff]
    %v129 = vld [vmem:[%s1 + $0x2e0] sm:$0xff]
    %v130 = vld [vmem:[%s1 + $0x2e8] sm:$0xff]
    %v131 = vld [vmem:[%s1 + $0x2f0] sm:$0xff]
    %v132 = vld [vmem:[%s1 + $0x2f8] sm:$0xff]
    %v133 = vld [vmem:[%s1 + $0x300] sm:$0xff]
    %v134 = vld [vmem:[%s1 + $0x308] sm:$0xff]
    %v135 = vld [vmem:[%s1 + $0x310] sm:$0xff]
    %v136 = vld [vmem:[%s1 + $0x318] sm:$0xff]
    %v137 = vld [vmem:[%s1 + $0x320] sm:$0xff]
    %v138 = vld [vmem:[%s1 + $0x328] sm:$0xff]
    %v139 = vld [vmem:[%s1 + $0x330] sm:$0xff]
    %v140 = vld [vmem:[%s1 + $0x338] sm:$0xff]
    %v141 = vld [vmem:[%s1 + $0x340] sm:$0xff]
    %v142 = vld [vmem:[%s1 + $0x348] sm:$0xff]
    %v143 = vld [vmem:[%s1 + $0x350] sm:$0xff]
    %v144 = vld [vmem:[%s1 + $0x358] sm:$0xff]
    %v145 = vld [vmem:[%s1 + $0x360] sm:$0xff]
    %v146 = vld [vmem:[%s1 + $0x368] sm:$0xff]
    %v147 = vld [vmem:[%s1 + $0x370] sm:$0xff]
    %v148 = vld [vmem:[%s1 + $0x378] sm:$0xff]
    %v149 = vld [vmem:[%s1 + $0x380] sm:$0xff]
    %v150 = vld [vmem:[%s1 + $0x388] sm:$0xff]
    %v151 = vld [vmem:[%s1 + $0x390] sm:$0xff]
    %v152 = vld [vmem:[%s1 + $0x398] sm:$0xff]
    %v153 = vld [vmem:[%s1 + $0x3a0] sm:$0xff]
    %v154 = vld [vmem:[%s1 + $0x3a8] sm:$0xff]
    %v155 = vld [vmem:[%s1 + $0x3b0] sm:$0xff]
    %v156 = vld [vmem:[%s1 + $0x3b8] sm:$0xff]
    %v157 = vld [vmem:[%s1 + $0x3c0] sm:$0xff]
    %v158 = vld [vmem:[%s1 + $0x3c8] sm:$0xff]
    %v159 = vld [vmem:[%s1 + $0x3d0] sm:$0xff]
    %v160 = vld [vmem:[%s1 + $0x3d8] sm:$0xff]
    %v161 = vld [vmem:[%s1 + $0x3e0] sm:$0xff]
    %v162 = vld [vmem:[%s1 + $0x3e8] sm:$0xff]
    %v163 = vld [vmem:[%s1 + $0x3f0] sm:$0xff]
    %v164 = vld [vmem:[%s1 + $0x3f8] sm:$0xff]
    %v165 = vunpack.c.l.bf16 %v37
    %v166 = vunpack.c.h.bf16 %v37
    %v167 = vunpack.c.l.bf16 %v38
    %v168 = vunpack.c.h.bf16 %v38
    %v169 = vunpack.c.l.bf16 %v39
    %v170 = vunpack.c.h.bf16 %v39
    %v171 = vunpack.c.l.bf16 %v40
    %v172 = vunpack.c.h.bf16 %v40
    %v173 = vunpack.c.l.bf16 %v41
    %v174 = vunpack.c.h.bf16 %v41
    %v175 = vunpack.c.l.bf16 %v42
    %v176 = vunpack.c.h.bf16 %v42
    %v177 = vunpack.c.l.bf16 %v43
    %v178 = vunpack.c.h.bf16 %v43
    %v179 = vunpack.c.l.bf16 %v44
    %v180 = vunpack.c.h.bf16 %v44
    %v181 = vunpack.c.l.bf16 %v45
    %v182 = vunpack.c.h.bf16 %v45
    %v183 = vunpack.c.l.bf16 %v46
    %v184 = vunpack.c.h.bf16 %v46
    %v185 = vunpack.c.l.bf16 %v47
    %v186 = vunpack.c.h.bf16 %v47
    %v187 = vunpack.c.l.bf16 %v48
    %v188 = vunpack.c.h.bf16 %v48
    %v189 = vunpack.c.l.bf16 %v49
    %v190 = vunpack.c.h.bf16 %v49
    %v191 = vunpack.c.l.bf16 %v50
    %v192 = vunpack.c.h.bf16 %v50
    %v193 = vunpack.c.l.bf16 %v51
    %v194 = vunpack.c.h.bf16 %v51
    %v195 = vunpack.c.l.bf16 %v52
    %v196 = vunpack.c.h.bf16 %v52
    %v197 = vunpack.c.l.bf16 %v53
    %v198 = vunpack.c.h.bf16 %v53
    %v199 = vunpack.c.l.bf16 %v54
    %v200 = vunpack.c.h.bf16 %v54
    %v201 = vunpack.c.l.bf16 %v55
    %v202 = vunpack.c.h.bf16 %v55
    %v203 = vunpack.c.l.bf16 %v56
    %v204 = vunpack.c.h.bf16 %v56
    %v205 = vunpack.c.l.bf16 %v57
    %v206 = vunpack.c.h.bf16 %v57
    %v207 = vunpack.c.l.bf16 %v58
    %v208 = vunpack.c.h.bf16 %v58
    %v209 = vunpack.c.l.bf16 %v59
    %v210 = vunpack.c.h.bf16 %v59
    %v211 = vunpack.c.l.bf16 %v60
    %v212 = vunpack.c.h.bf16 %v60
    %v213 = vunpack.c.l.bf16 %v61
    %v214 = vunpack.c.h.bf16 %v61
    %v215 = vunpack.c.l.bf16 %v62
    %v216 = vunpack.c.h.bf16 %v62
    %v217 = vunpack.c.l.bf16 %v63
    %v218 = vunpack.c.h.bf16 %v63
    %v219 = vunpack.c.l.bf16 %v64
    %v220 = vunpack.c.h.bf16 %v64
    %v221 = vunpack.c.l.bf16 %v65
    %v222 = vunpack.c.h.bf16 %v65
    %v223 = vunpack.c.l.bf16 %v66
    %v224 = vunpack.c.h.bf16 %v66
    %v225 = vunpack.c.l.bf16 %v67
    %v226 = vunpack.c.h.bf16 %v67
    %v227 = vunpack.c.l.bf16 %v68
    %v228 = vunpack.c.h.bf16 %v68
    %v229 = vunpack.c.l.bf16 %v69
    %v230 = vunpack.c.h.bf16 %v69
    %v231 = vunpack.c.l.bf16 %v70
    %v232 = vunpack.c.h.bf16 %v70
    %v233 = vunpack.c.l.bf16 %v71
    %v234 = vunpack.c.h.bf16 %v71
    %v235 = vunpack.c.l.bf16 %v72
    %v236 = vunpack.c.h.bf16 %v72
    %v237 = vunpack.c.l.bf16 %v73
    %v238 = vunpack.c.h.bf16 %v73
    %v239 = vunpack.c.l.bf16 %v74
    %v240 = vunpack.c.h.bf16 %v74
    %v241 = vunpack.c.l.bf16 %v75
    %v242 = vunpack.c.h.bf16 %v75
    %v243 = vunpack.c.l.bf16 %v76
    %v244 = vunpack.c.h.bf16 %v76
    %v245 = vunpack.c.l.bf16 %v77
    %v246 = vunpack.c.h.bf16 %v77
    %v247 = vunpack.c.l.bf16 %v78
    %v248 = vunpack.c.h.bf16 %v78
    %v249 = vunpack.c.l.bf16 %v79
    %v250 = vunpack.c.h.bf16 %v79
    %v251 = vunpack.c.l.bf16 %v80
    %v252 = vunpack.c.h.bf16 %v80
    %v253 = vunpack.c.l.bf16 %v81
    %v254 = vunpack.c.h.bf16 %v81
    %v255 = vunpack.c.l.bf16 %v82
    %v256 = vunpack.c.h.bf16 %v82
    %v257 = vunpack.c.l.bf16 %v83
    %v258 = vunpack.c.h.bf16 %v83
    %v259 = vunpack.c.l.bf16 %v84
    %v260 = vunpack.c.h.bf16 %v84
    %v261 = vunpack.c.l.bf16 %v85
    %v262 = vunpack.c.h.bf16 %v85
    %v263 = vunpack.c.l.bf16 %v86
    %v264 = vunpack.c.h.bf16 %v86
    %v265 = vunpack.c.l.bf16 %v87
    %v266 = vunpack.c.h.bf16 %v87
    %v267 = vunpack.c.l.bf16 %v88
    %v268 = vunpack.c.h.bf16 %v88
    %v269 = vunpack.c.l.bf16 %v89
    %v270 = vunpack.c.h.bf16 %v89
    %v271 = vunpack.c.l.bf16 %v90
    %v272 = vunpack.c.h.bf16 %v90
    %v273 = vunpack.c.l.bf16 %v91
    %v274 = vunpack.c.h.bf16 %v91
    %v275 = vunpack.c.l.bf16 %v92
    %v276 = vunpack.c.h.bf16 %v92
    %v277 = vunpack.c.l.bf16 %v93
    %v278 = vunpack.c.h.bf16 %v93
    %v279 = vunpack.c.l.bf16 %v94
    %v280 = vunpack.c.h.bf16 %v94
    %v281 = vunpack.c.l.bf16 %v95
    %v282 = vunpack.c.h.bf16 %v95
    %v283 = vunpack.c.l.bf16 %v96
    %v284 = vunpack.c.h.bf16 %v96
    %v285 = vunpack.c.l.bf16 %v97
    %v286 = vunpack.c.h.bf16 %v97
    %v287 = vunpack.c.l.bf16 %v98
    %v288 = vunpack.c.h.bf16 %v98
    %v289 = vunpack.c.l.bf16 %v99
    %v290 = vunpack.c.h.bf16 %v99
    %v291 = vunpack.c.l.bf16 %v100
    %v292 = vunpack.c.h.bf16 %v100
    %v293 = vunpack.c.l.bf16 %v101
    %v294 = vunpack.c.h.bf16 %v101
    %v295 = vunpack.c.l.bf16 %v102
    %v296 = vunpack.c.h.bf16 %v102
    %v297 = vunpack.c.l.bf16 %v103
    %v298 = vunpack.c.h.bf16 %v103
    %v299 = vunpack.c.l.bf16 %v104
    %v300 = vunpack.c.h.bf16 %v104
    %v301 = vunpack.c.l.bf16 %v105
    %v302 = vunpack.c.h.bf16 %v105
    %v303 = vunpack.c.l.bf16 %v106
    %v304 = vunpack.c.h.bf16 %v106
    %v305 = vunpack.c.l.bf16 %v107
    %v306 = vunpack.c.h.bf16 %v107
    %v307 = vunpack.c.l.bf16 %v108
    %v308 = vunpack.c.h.bf16 %v108
    %v309 = vunpack.c.l.bf16 %v109
    %v310 = vunpack.c.h.bf16 %v109
    %v311 = vunpack.c.l.bf16 %v110
    %v312 = vunpack.c.h.bf16 %v110
    %v313 = vunpack.c.l.bf16 %v111
    %v314 = vunpack.c.h.bf16 %v111
    %v315 = vunpack.c.l.bf16 %v112
    %v316 = vunpack.c.h.bf16 %v112
    %v317 = vunpack.c.l.bf16 %v113
    %v318 = vunpack.c.h.bf16 %v113
    %v319 = vunpack.c.l.bf16 %v114
    %v320 = vunpack.c.h.bf16 %v114
    %v321 = vunpack.c.l.bf16 %v115
    %v322 = vunpack.c.h.bf16 %v115
    %v323 = vunpack.c.l.bf16 %v116
    %v324 = vunpack.c.h.bf16 %v116
    %v325 = vunpack.c.l.bf16 %v117
    %v326 = vunpack.c.h.bf16 %v117
    %v327 = vunpack.c.l.bf16 %v118
    %v328 = vunpack.c.h.bf16 %v118
    %v329 = vunpack.c.l.bf16 %v119
    %v330 = vunpack.c.h.bf16 %v119
    %v331 = vunpack.c.l.bf16 %v120
    %v332 = vunpack.c.h.bf16 %v120
    %v333 = vunpack.c.l.bf16 %v121
    %v334 = vunpack.c.h.bf16 %v121
    %v335 = vunpack.c.l.bf16 %v122
    %v336 = vunpack.c.h.bf16 %v122
    %v337 = vunpack.c.l.bf16 %v123
    %v338 = vunpack.c.h.bf16 %v123
    %v339 = vunpack.c.l.bf16 %v124
    %v340 = vunpack.c.h.bf16 %v124
    %v341 = vunpack.c.l.bf16 %v125
    %v342 = vunpack.c.h.bf16 %v125
    %v343 = vunpack.c.l.bf16 %v126
    %v344 = vunpack.c.h.bf16 %v126
    %v345 = vunpack.c.l.bf16 %v127
    %v346 = vunpack.c.h.bf16 %v127
    %v347 = vunpack.c.l.bf16 %v128
    %v348 = vunpack.c.h.bf16 %v128
    %v349 = vunpack.c.l.bf16 %v129
    %v350 = vunpack.c.h.bf16 %v129
    %v351 = vunpack.c.l.bf16 %v130
    %v352 = vunpack.c.h.bf16 %v130
    %v353 = vunpack.c.l.bf16 %v131
    %v354 = vunpack.c.h.bf16 %v131
    %v355 = vunpack.c.l.bf16 %v132
    %v356 = vunpack.c.h.bf16 %v132
    %v357 = vunpack.c.l.bf16 %v133
    %v358 = vunpack.c.h.bf16 %v133
    %v359 = vunpack.c.l.bf16 %v134
    %v360 = vunpack.c.h.bf16 %v134
    %v361 = vunpack.c.l.bf16 %v135
    %v362 = vunpack.c.h.bf16 %v135
    %v363 = vunpack.c.l.bf16 %v136
    %v364 = vunpack.c.h.bf16 %v136
    %v365 = vunpack.c.l.bf16 %v137
    %v366 = vunpack.c.h.bf16 %v137
    %v367 = vunpack.c.l.bf16 %v138
    %v368 = vunpack.c.h.bf16 %v138
    %v369 = vunpack.c.l.bf16 %v139
    %v370 = vunpack.c.h.bf16 %v139
    %v371 = vunpack.c.l.bf16 %v140
    %v372 = vunpack.c.h.bf16 %v140
    %v373 = vunpack.c.l.bf16 %v141
    %v374 = vunpack.c.h.bf16 %v141
    %v375 = vunpack.c.l.bf16 %v142
    %v376 = vunpack.c.h.bf16 %v142
    %v377 = vunpack.c.l.bf16 %v143
    %v378 = vunpack.c.h.bf16 %v143
    %v379 = vunpack.c.l.bf16 %v144
    %v380 = vunpack.c.h.bf16 %v144
    %v381 = vunpack.c.l.bf16 %v145
    %v382 = vunpack.c.h.bf16 %v145
    %v383 = vunpack.c.l.bf16 %v146
    %v384 = vunpack.c.h.bf16 %v146
    %v385 = vunpack.c.l.bf16 %v147
    %v386 = vunpack.c.h.bf16 %v147
    %v387 = vunpack.c.l.bf16 %v148
    %v388 = vunpack.c.h.bf16 %v148
    %v389 = vunpack.c.l.bf16 %v149
    %v390 = vunpack.c.h.bf16 %v149
    %v391 = vunpack.c.l.bf16 %v150
    %v392 = vunpack.c.h.bf16 %v150
    %v393 = vunpack.c.l.bf16 %v151
    %v394 = vunpack.c.h.bf16 %v151
    %v395 = vunpack.c.l.bf16 %v152
    %v396 = vunpack.c.h.bf16 %v152
    %v397 = vunpack.c.l.bf16 %v153
    %v398 = vunpack.c.h.bf16 %v153
    %v399 = vunpack.c.l.bf16 %v154
    %v400 = vunpack.c.h.bf16 %v154
    %v401 = vunpack.c.l.bf16 %v155
    %v402 = vunpack.c.h.bf16 %v155
    %v403 = vunpack.c.l.bf16 %v156
    %v404 = vunpack.c.h.bf16 %v156
    %v405 = vunpack.c.l.bf16 %v157
    %v406 = vunpack.c.h.bf16 %v157
    %v407 = vunpack.c.l.bf16 %v158
    %v408 = vunpack.c.h.bf16 %v158
    %v409 = vunpack.c.l.bf16 %v159
    %v410 = vunpack.c.h.bf16 %v159
    %v411 = vunpack.c.l.bf16 %v160
    %v412 = vunpack.c.h.bf16 %v160
    %v413 = vunpack.c.l.bf16 %v161
    %v414 = vunpack.c.h.bf16 %v161
    %v415 = vunpack.c.l.bf16 %v162
    %v416 = vunpack.c.h.bf16 %v162
    %v417 = vunpack.c.l.bf16 %v163
    %v418 = vunpack.c.h.bf16 %v163
    %v419 = vunpack.c.l.bf16 %v164
    %v420 = vunpack.c.h.bf16 %v164
    %v421 = vld [vmem:[#allocation2] sm:$0xf]
    %v424 = vcombine.high %v35, %v35
    %v426 = vunpack.c.l.s4 1983009808
    %v427 = vunpack.c.0.s8 %v426
    %v428 = vlaneseq
    %v429 = vshrl.u32 %v428, 7
    %v430 = vsub.s32 %v427, %v429
    %v431 = vrot.slane %v35, %v430
    %v433 = vunpack.c.l.s4 1983009808
    %v434 = vunpack.c.0.s8 %v433
    %v435 = vlaneseq
    %v436 = vshrl.u32 %v435, 7
    %v437 = vsub.s32 %v434, %v436
    %v438 = vrot.slane %v424, %v437
    %v439 = vcombine.high %v431, %v431
    %v440 = vcombine.high %v438, %v438
    %v441 = vcombine.high %v36, %v36
    %v443 = vunpack.c.l.s4 1983009808
    %v444 = vunpack.c.0.s8 %v443
    %v445 = vlaneseq
    %v446 = vshrl.u32 %v445, 7
    %v447 = vsub.s32 %v444, %v446
    %v448 = vrot.slane %v36, %v447
    %v450 = vunpack.c.l.s4 1983009808
    %v451 = vunpack.c.0.s8 %v450
    %v452 = vlaneseq
    %v453 = vshrl.u32 %v452, 7
    %v454 = vsub.s32 %v451, %v453
    %v455 = vrot.slane %v441, %v454
    %v456 = vcombine.high %v448, %v448
    %v457 = vcombine.high %v455, %v455
    %466 = vmatprep.subr.mxu0 %v196
    %467 = vmatpush1.msra.mxu0 %v195
    %468 = vmatprep.subr.mxu0 %v194
    %469 = vmatpush1.msra.mxu0 %v193
    %470 = vmatprep.subr.mxu0 %v192
    %471 = vmatpush1.msra.mxu0 %v191
    %472 = vmatprep.subr.mxu0 %v190
    %473 = vmatpush1.msra.mxu0 %v189
    %474 = vmatprep.subr.mxu0 %v188
    %475 = vmatpush1.msra.mxu0 %v187
    %476 = vmatprep.subr.mxu0 %v186
    %477 = vmatpush1.msra.mxu0 %v185
    %478 = vmatprep.subr.mxu0 %v184
    %479 = vmatpush1.msra.mxu0 %v183
    %480 = vmatprep.subr.mxu0 %v182
    %481 = vmatpush1.msra.mxu0 %v181
    %482 = vmatprep.subr.mxu0 %v180
    %483 = vmatpush1.msra.mxu0 %v179
    %484 = vmatprep.subr.mxu0 %v178
    %485 = vmatpush1.msra.mxu0 %v177
    %486 = vmatprep.subr.mxu0 %v176
    %487 = vmatpush1.msra.mxu0 %v175
    %488 = vmatprep.subr.mxu0 %v174
    %489 = vmatpush1.msra.mxu0 %v173
    %490 = vmatprep.subr.mxu0 %v172
    %491 = vmatpush1.msra.mxu0 %v171
    %492 = vmatprep.subr.mxu0 %v170
    %493 = vmatpush1.msra.mxu0 %v169
    %494 = vmatprep.subr.mxu0 %v168
    %495 = vmatpush1.msra.mxu0 %v167
    %496 = vmatprep.subr.mxu0 %v166
    %497 = vmatpush1.msra.mxu0 %v165
    %498 = vmatprep.subr.mxu0 %v228
    %499 = vmatpush2.msra.mxu0 %v227
    %500 = vmatprep.subr.mxu0 %v226
    %501 = vmatpush2.msra.mxu0 %v225
    %502 = vmatprep.subr.mxu0 %v224
    %503 = vmatpush2.msra.mxu0 %v223
    %504 = vmatprep.subr.mxu0 %v222
    %505 = vmatpush2.msra.mxu0 %v221
    %506 = vmatprep.subr.mxu0 %v220
    %507 = vmatpush2.msra.mxu0 %v219
    %508 = vmatprep.subr.mxu0 %v218
    %509 = vmatpush2.msra.mxu0 %v217
    %510 = vmatprep.subr.mxu0 %v216
    %511 = vmatpush2.msra.mxu0 %v215
    %512 = vmatprep.subr.mxu0 %v214
    %513 = vmatpush2.msra.mxu0 %v213
    %514 = vmatprep.subr.mxu0 %v212
    %515 = vmatpush2.msra.mxu0 %v211
    %516 = vmatprep.subr.mxu0 %v210
    %517 = vmatpush2.msra.mxu0 %v209
    %518 = vmatprep.subr.mxu0 %v208
    %519 = vmatpush2.msra.mxu0 %v207
    %520 = vmatprep.subr.mxu0 %v206
    %521 = vmatpush2.msra.mxu0 %v205
    %522 = vmatprep.subr.mxu0 %v204
    %523 = vmatpush2.msra.mxu0 %v203
    %524 = vmatprep.subr.mxu0 %v202
    %525 = vmatpush2.msra.mxu0 %v201
    %526 = vmatprep.subr.mxu0 %v200
    %527 = vmatpush2.msra.mxu0 %v199
    %528 = vmatprep.subr.mxu0 %v198
    %529 = vmatpush2.msra.mxu0 %v197
    %530 = vmatprep.mubr.f32.mxu0 %v439
    %531 = vmatmul.mubr.f32.gmra.mxu0 %v431
    %v532 = vpop.f32.mrf.mxu0
    %v533 = vadd.f32 0.0, %v532
    %v534 = vpop.f32.mrf.mxu0
    %v535 = vadd.f32 0.0, %v534
    %536 = vdwg.mxu0
    %537 = vmatprep.subr.mxu0 %v260
    %538 = vmatpush1.msra.mxu0 %v259
    %539 = vmatprep.subr.mxu0 %v258
    %540 = vmatpush1.msra.mxu0 %v257
    %541 = vmatprep.subr.mxu0 %v256
    %542 = vmatpush1.msra.mxu0 %v255
    %543 = vmatprep.subr.mxu0 %v254
    %544 = vmatpush1.msra.mxu0 %v253
    %545 = vmatprep.subr.mxu0 %v252
    %546 = vmatpush1.msra.mxu0 %v251
    %547 = vmatprep.subr.mxu0 %v250
    %548 = vmatpush1.msra.mxu0 %v249
    %549 = vmatprep.subr.mxu0 %v248
    %550 = vmatpush1.msra.mxu0 %v247
    %551 = vmatprep.subr.mxu0 %v246
    %552 = vmatpush1.msra.mxu0 %v245
    %553 = vmatprep.subr.mxu0 %v244
    %554 = vmatpush1.msra.mxu0 %v243
    %555 = vmatprep.subr.mxu0 %v242
    %556 = vmatpush1.msra.mxu0 %v241
    %557 = vmatprep.subr.mxu0 %v240
    %558 = vmatpush1.msra.mxu0 %v239
    %559 = vmatprep.subr.mxu0 %v238
    %560 = vmatpush1.msra.mxu0 %v237
    %561 = vmatprep.subr.mxu0 %v236
    %562 = vmatpush1.msra.mxu0 %v235
    %563 = vmatprep.subr.mxu0 %v234
    %564 = vmatpush1.msra.mxu0 %v233
    %565 = vmatprep.subr.mxu0 %v232
    %566 = vmatpush1.msra.mxu0 %v231
    %567 = vmatprep.subr.mxu0 %v230
    %568 = vmatpush1.msra.mxu0 %v229
    %569 = vmatprep.subr.mxu0 %v292
    %570 = vmatpush2.msra.mxu0 %v291
    %571 = vmatprep.subr.mxu0 %v290
    %572 = vmatpush2.msra.mxu0 %v289
    %573 = vmatprep.subr.mxu0 %v288
    %574 = vmatpush2.msra.mxu0 %v287
    %575 = vmatprep.subr.mxu0 %v286
    %576 = vmatpush2.msra.mxu0 %v285
    %577 = vmatprep.subr.mxu0 %v284
    %578 = vmatpush2.msra.mxu0 %v283
    %579 = vmatprep.subr.mxu0 %v282
    %580 = vmatpush2.msra.mxu0 %v281
    %581 = vmatprep.subr.mxu0 %v280
    %582 = vmatpush2.msra.mxu0 %v279
    %583 = vmatprep.subr.mxu0 %v278
    %584 = vmatpush2.msra.mxu0 %v277
    %585 = vmatprep.subr.mxu0 %v276
    %586 = vmatpush2.msra.mxu0 %v275
    %587 = vmatprep.subr.mxu0 %v274
    %588 = vmatpush2.msra.mxu0 %v273
    %589 = vmatprep.subr.mxu0 %v272
    %590 = vmatpush2.msra.mxu0 %v271
    %591 = vmatprep.subr.mxu0 %v270
    %592 = vmatpush2.msra.mxu0 %v269
    %593 = vmatprep.subr.mxu0 %v268
    %594 = vmatpush2.msra.mxu0 %v267
    %595 = vmatprep.subr.mxu0 %v266
    %596 = vmatpush2.msra.mxu0 %v265
    %597 = vmatprep.subr.mxu0 %v264
    %598 = vmatpush2.msra.mxu0 %v263
    %599 = vmatprep.subr.mxu0 %v262
    %600 = vmatpush2.msra.mxu0 %v261
    %601 = vmatprep.mubr.f32.mxu0 %v440
    %602 = vmatmul.mubr.f32.gmra.mxu0 %v438
    %v603 = vpop.f32.mrf.mxu0
    %v604 = vadd.f32 %v533, %v603
    %v605 = vpop.f32.mrf.mxu0
    %v606 = vadd.f32 %v535, %v605
    %607 = vdwg.mxu0
    %608 = vmatprep.subr.mxu0 %v324
    %609 = vmatpush1.msra.mxu0 %v323
    %610 = vmatprep.subr.mxu0 %v322
    %611 = vmatpush1.msra.mxu0 %v321
    %612 = vmatprep.subr.mxu0 %v320
    %613 = vmatpush1.msra.mxu0 %v319
    %614 = vmatprep.subr.mxu0 %v318
    %615 = vmatpush1.msra.mxu0 %v317
    %616 = vmatprep.subr.mxu0 %v316
    %617 = vmatpush1.msra.mxu0 %v315
    %618 = vmatprep.subr.mxu0 %v314
    %619 = vmatpush1.msra.mxu0 %v313
    %620 = vmatprep.subr.mxu0 %v312
    %621 = vmatpush1.msra.mxu0 %v311
    %622 = vmatprep.subr.mxu0 %v310
    %623 = vmatpush1.msra.mxu0 %v309
    %624 = vmatprep.subr.mxu0 %v308
    %625 = vmatpush1.msra.mxu0 %v307
    %626 = vmatprep.subr.mxu0 %v306
    %627 = vmatpush1.msra.mxu0 %v305
    %628 = vmatprep.subr.mxu0 %v304
    %629 = vmatpush1.msra.mxu0 %v303
    %630 = vmatprep.subr.mxu0 %v302
    %631 = vmatpush1.msra.mxu0 %v301
    %632 = vmatprep.subr.mxu0 %v300
    %633 = vmatpush1.msra.mxu0 %v299
    %634 = vmatprep.subr.mxu0 %v298
    %635 = vmatpush1.msra.mxu0 %v297
    %636 = vmatprep.subr.mxu0 %v296
    %637 = vmatpush1.msra.mxu0 %v295
    %638 = vmatprep.subr.mxu0 %v294
    %639 = vmatpush1.msra.mxu0 %v293
    %640 = vmatprep.subr.mxu0 %v356
    %641 = vmatpush2.msra.mxu0 %v355
    %642 = vmatprep.subr.mxu0 %v354
    %643 = vmatpush2.msra.mxu0 %v353
    %644 = vmatprep.subr.mxu0 %v352
    %645 = vmatpush2.msra.mxu0 %v351
    %646 = vmatprep.subr.mxu0 %v350
    %647 = vmatpush2.msra.mxu0 %v349
    %648 = vmatprep.subr.mxu0 %v348
    %649 = vmatpush2.msra.mxu0 %v347
    %650 = vmatprep.subr.mxu0 %v346
    %651 = vmatpush2.msra.mxu0 %v345
    %652 = vmatprep.subr.mxu0 %v344
    %653 = vmatpush2.msra.mxu0 %v343
    %654 = vmatprep.subr.mxu0 %v342
    %655 = vmatpush2.msra.mxu0 %v341
    %656 = vmatprep.subr.mxu0 %v340
    %657 = vmatpush2.msra.mxu0 %v339
    %658 = vmatprep.subr.mxu0 %v338
    %659 = vmatpush2.msra.mxu0 %v337
    %660 = vmatprep.subr.mxu0 %v336
    %661 = vmatpush2.msra.mxu0 %v335
    %662 = vmatprep.subr.mxu0 %v334
    %663 = vmatpush2.msra.mxu0 %v333
    %664 = vmatprep.subr.mxu0 %v332
    %665 = vmatpush2.msra.mxu0 %v331
    %666 = vmatprep.subr.mxu0 %v330
    %667 = vmatpush2.msra.mxu0 %v329
    %668 = vmatprep.subr.mxu0 %v328
    %669 = vmatpush2.msra.mxu0 %v327
    %670 = vmatprep.subr.mxu0 %v326
    %671 = vmatpush2.msra.mxu0 %v325
    %672 = vmatprep.mubr.f32.mxu0 %v456
    %673 = vmatmul.mubr.f32.gmra.mxu0 %v448
    %v674 = vpop.f32.mrf.mxu0
    %v675 = vadd.f32 %v604, %v674
    %v676 = vpop.f32.mrf.mxu0
    %v677 = vadd.f32 %v606, %v676
    %678 = vdwg.mxu0
    %679 = vmatprep.subr.mxu0 %v388
    %680 = vmatpush1.msra.mxu0 %v387
    %681 = vmatprep.subr.mxu0 %v386
    %682 = vmatpush1.msra.mxu0 %v385
    %683 = vmatprep.subr.mxu0 %v384
    %684 = vmatpush1.msra.mxu0 %v383
    %685 = vmatprep.subr.mxu0 %v382
    %686 = vmatpush1.msra.mxu0 %v381
    %687 = vmatprep.subr.mxu0 %v380
    %688 = vmatpush1.msra.mxu0 %v379
    %689 = vmatprep.subr.mxu0 %v378
    %690 = vmatpush1.msra.mxu0 %v377
    %691 = vmatprep.subr.mxu0 %v376
    %692 = vmatpush1.msra.mxu0 %v375
    %693 = vmatprep.subr.mxu0 %v374
    %694 = vmatpush1.msra.mxu0 %v373
    %695 = vmatprep.subr.mxu0 %v372
    %696 = vmatpush1.msra.mxu0 %v371
    %697 = vmatprep.subr.mxu0 %v370
    %698 = vmatpush1.msra.mxu0 %v369
    %699 = vmatprep.subr.mxu0 %v368
    %700 = vmatpush1.msra.mxu0 %v367
    %701 = vmatprep.subr.mxu0 %v366
    %702 = vmatpush1.msra.mxu0 %v365
    %703 = vmatprep.subr.mxu0 %v364
    %704 = vmatpush1.msra.mxu0 %v363
    %705 = vmatprep.subr.mxu0 %v362
    %706 = vmatpush1.msra.mxu0 %v361
    %707 = vmatprep.subr.mxu0 %v360
    %708 = vmatpush1.msra.mxu0 %v359
    %709 = vmatprep.subr.mxu0 %v358
    %710 = vmatpush1.msra.mxu0 %v357
    %711 = vmatprep.subr.mxu0 %v420
    %712 = vmatpush2.msra.mxu0 %v419
    %713 = vmatprep.subr.mxu0 %v418
    %714 = vmatpush2.msra.mxu0 %v417
    %715 = vmatprep.subr.mxu0 %v416
    %716 = vmatpush2.msra.mxu0 %v415
    %717 = vmatprep.subr.mxu0 %v414
    %718 = vmatpush2.msra.mxu0 %v413
    %719 = vmatprep.subr.mxu0 %v412
    %720 = vmatpush2.msra.mxu0 %v411
    %721 = vmatprep.subr.mxu0 %v410
    %722 = vmatpush2.msra.mxu0 %v409
    %723 = vmatprep.subr.mxu0 %v408
    %724 = vmatpush2.msra.mxu0 %v407
    %725 = vmatprep.subr.mxu0 %v406
    %726 = vmatpush2.msra.mxu0 %v405
    %727 = vmatprep.subr.mxu0 %v404
    %728 = vmatpush2.msra.mxu0 %v403
    %729 = vmatprep.subr.mxu0 %v402
    %730 = vmatpush2.msra.mxu0 %v401
    %731 = vmatprep.subr.mxu0 %v400
    %732 = vmatpush2.msra.mxu0 %v399
    %733 = vmatprep.subr.mxu0 %v398
    %734 = vmatpush2.msra.mxu0 %v397
    %735 = vmatprep.subr.mxu0 %v396
    %736 = vmatpush2.msra.mxu0 %v395
    %737 = vmatprep.subr.mxu0 %v394
    %738 = vmatpush2.msra.mxu0 %v393
    %739 = vmatprep.subr.mxu0 %v392
    %740 = vmatpush2.msra.mxu0 %v391
    %741 = vmatprep.subr.mxu0 %v390
    %742 = vmatpush2.msra.mxu0 %v389
    %743 = vmatprep.mubr.f32.mxu0 %v457
    %744 = vmatmul.mubr.f32.gmra.mxu0 %v455
    %v745 = vpop.f32.mrf.mxu0
    %v746 = vadd.f32 %v675, %v745
    %v747 = vpop.f32.mrf.mxu0
    %v748 = vadd.f32 %v677, %v747
    %749 = vdwg.mxu0
    %v752 = vcombine.low %v746, %v748
    %v754 = vunpack.c.l.s4 1983009808
    %v755 = vunpack.c.0.s8 %v754
    %v756 = vlaneseq
    %v757 = vshrl.u32 %v756, 7
    %v758 = vsub.s32 %v755, %v757
    %v759 = vrot.slane %v752, %v758
    %v761 = vadd.f32 %v421, %v759
    %vm762 = vcmask 1041408
    %vm763 = vcmask 175106
    %vm764 = vmor %vm763, %vm762
    %765 = vst.msk [vmem:[#allocation2] sm:$0xf] %vm764, %v761
    // Predicated region
    $region34: #{tpu_custom_call.1} parent=1 // pred_check
      %p766 = pneg %p27
    $region35: #{tpu_custom_call.1} parent=1 // pred_check_branch
      %768 = sbr.rel (%p766) target = $region37
    $region36: #{tpu_custom_call.1} parent=1 // pred_region
      %v769 = vld [vmem:[#allocation2] sm:$0xf]
      %v770 = vld [vmem:[%s2] sm:$0x3]
      %v772 = vlaneseq
      %v773 = vshrl.u32 %v772, 7
      %v774 = vsub.s32 0, %v773
      %v775 = vrot.slane %v770, %v774
      %v776 = vlaneseq
      %v777 = vshrl.u32 %v776, 7
      %v778 = vsub.s32 1, %v777
      %v779 = vrot.slane %v770, %v778
      %v780 = vcombine.low %v775, %v779
      %v782 = vunpack.c.l.s4 1983009808
      %v783 = vunpack.c.0.s8 %v782
      %v784 = vlaneseq
      %v785 = vshrl.u32 %v784, 7
      %v786 = vsub.s32 %v783, %v785
      %v787 = vrot.slane %v780, %v786
      %v789 = vadd.f32 %v769, %v787
      %vm790 = vcmp.gt.f32.partialorder %v789, 0.0
      %v791 = vmul.f32 %v789, 0.01
      %v792 = vsel %vm790, %v789, %v791
      %v793 = vld [vmem:[%s3] sm:$0xf]
      %v794 = vld [vmem:[%s3 + $0x4] sm:$0xf]
      %v795 = vld [vmem:[%s3 + $0x8] sm:$0xf]
      %v796 = vld [vmem:[%s3 + $0xc] sm:$0xf]
      %v797 = vld [vmem:[%s3 + $0x10] sm:$0xf]
      %v798 = vld [vmem:[%s3 + $0x14] sm:$0xf]
      %v799 = vld [vmem:[%s3 + $0x18] sm:$0xf]
      %v800 = vld [vmem:[%s3 + $0x1c] sm:$0xf]
      %v801 = vld [vmem:[%s3 + $0x20] sm:$0xf]
      %v802 = vld [vmem:[%s3 + $0x24] sm:$0xf]
      %v803 = vld [vmem:[%s3 + $0x28] sm:$0xf]
      %v804 = vld [vmem:[%s3 + $0x2c] sm:$0xf]
      %v805 = vld [vmem:[%s3 + $0x30] sm:$0xf]
      %v806 = vld [vmem:[%s3 + $0x34] sm:$0xf]
      %v807 = vld [vmem:[%s3 + $0x38] sm:$0xf]
      %v808 = vld [vmem:[%s3 + $0x3c] sm:$0xf]
      %v809 = vld [vmem:[%s3 + $0x40] sm:$0xf]
      %v810 = vld [vmem:[%s3 + $0x44] sm:$0xf]
      %v811 = vld [vmem:[%s3 + $0x48] sm:$0x7]
      %v812 = vunpack.c.l.bf16 %v793
      %v813 = vunpack.c.l.bf16 %v794
      %v814 = vunpack.c.l.bf16 %v795
      %v815 = vunpack.c.l.bf16 %v796
      %v816 = vunpack.c.l.bf16 %v797
      %v817 = vunpack.c.l.bf16 %v798
      %v818 = vunpack.c.l.bf16 %v799
      %v819 = vunpack.c.l.bf16 %v800
      %v820 = vunpack.c.l.bf16 %v801
      %v821 = vunpack.c.l.bf16 %v802
      %v822 = vunpack.c.l.bf16 %v803
      %v823 = vunpack.c.l.bf16 %v804
      %v824 = vunpack.c.l.bf16 %v805
      %v825 = vunpack.c.l.bf16 %v806
      %v826 = vunpack.c.l.bf16 %v807
      %v827 = vunpack.c.l.bf16 %v808
      %v828 = vunpack.c.l.bf16 %v809
      %v829 = vunpack.c.l.bf16 %v810
      %v830 = vunpack.c.l.bf16 %v811
      %v831 = vld [vmem:[%s4] sm:$0x1]
      %v833 = vlaneseq
      %v834 = vshrl.u32 %v833, 7
      %v835 = vsub.s32 0, %v834
      %v836 = vrot.slane %v831, %v835
      %v840 = vunpack.c.l.s4 1983009808
      %v841 = vunpack.c.0.s8 %v840
      %v842 = vlaneseq
      %v843 = vshrl.u32 %v842, 7
      %v844 = vsub.s32 %v841, %v843
      %v845 = vrot.slane %v792, %v844
      %v846 = vcombine.high %v845, %v845
      %vm848 = vcmask 179200
      %v849 = vsel %vm848, %v846, 0
      %vm851 = vcmask 1045504
      %v853 = vsel %vm851, %v830, 0
      %855 = vmatprep.subr.mxu0 0.0
      %856 = vmatpush1.msra.mxu0 %v827
      %857 = vmatprep.subr.mxu0 0.0
      %858 = vmatpush1.msra.mxu0 %v826
      %859 = vmatprep.subr.mxu0 0.0
      %860 = vmatpush1.msra.mxu0 %v825
      %861 = vmatprep.subr.mxu0 0.0
      %862 = vmatpush1.msra.mxu0 %v824
      %863 = vmatprep.subr.mxu0 0.0
      %864 = vmatpush1.msra.mxu0 %v823
      %865 = vmatprep.subr.mxu0 0.0
      %866 = vmatpush1.msra.mxu0 %v822
      %867 = vmatprep.subr.mxu0 0.0
      %868 = vmatpush1.msra.mxu0 %v821
      %869 = vmatprep.subr.mxu0 0.0
      %870 = vmatpush1.msra.mxu0 %v820
      %871 = vmatprep.subr.mxu0 0.0
      %872 = vmatpush1.msra.mxu0 %v819
      %873 = vmatprep.subr.mxu0 0.0
      %874 = vmatpush1.msra.mxu0 %v818
      %875 = vmatprep.subr.mxu0 0.0
      %876 = vmatpush1.msra.mxu0 %v817
      %877 = vmatprep.subr.mxu0 0.0
      %878 = vmatpush1.msra.mxu0 %v816
      %879 = vmatprep.subr.mxu0 0.0
      %880 = vmatpush1.msra.mxu0 %v815
      %881 = vmatprep.subr.mxu0 0.0
      %882 = vmatpush1.msra.mxu0 %v814
      %883 = vmatprep.subr.mxu0 0.0
      %884 = vmatpush1.msra.mxu0 %v813
      %885 = vmatprep.subr.mxu0 0.0
      %886 = vmatpush1.msra.mxu0 %v812
      %887 = vmatprep.subr.mxu0 0.0
      %888 = vmatpush2.msra.mxu0 0.0
      %889 = vmatprep.subr.mxu0 0.0
      %890 = vmatpush2.msra.mxu0 0.0
      %891 = vmatprep.subr.mxu0 0.0
      %892 = vmatpush2.msra.mxu0 0.0
      %893 = vmatprep.subr.mxu0 0.0
      %894 = vmatpush2.msra.mxu0 0.0
      %895 = vmatprep.subr.mxu0 0.0
      %896 = vmatpush2.msra.mxu0 0.0
      %897 = vmatprep.subr.mxu0 0.0
      %898 = vmatpush2.msra.mxu0 0.0
      %899 = vmatprep.subr.mxu0 0.0
      %900 = vmatpush2.msra.mxu0 0.0
      %901 = vmatprep.subr.mxu0 0.0
      %902 = vmatpush2.msra.mxu0 0.0
      %903 = vmatprep.subr.mxu0 0.0
      %904 = vmatpush2.msra.mxu0 0.0
      %905 = vmatprep.subr.mxu0 0.0
      %906 = vmatpush2.msra.mxu0 0.0
      %907 = vmatprep.subr.mxu0 0.0
      %908 = vmatpush2.msra.mxu0 0.0
      %909 = vmatprep.subr.mxu0 0.0
      %910 = vmatpush2.msra.mxu0 0.0
      %911 = vmatprep.subr.mxu0 0.0
      %912 = vmatpush2.msra.mxu0 0.0
      %913 = vmatprep.subr.mxu0 0.0
      %914 = vmatpush2.msra.mxu0 %v853
      %915 = vmatprep.subr.mxu0 0.0
      %916 = vmatpush2.msra.mxu0 %v829
      %917 = vmatprep.subr.mxu0 0.0
      %918 = vmatpush2.msra.mxu0 %v828
      %919 = vmatprep.mubr.f32.mxu0 %v849
      %920 = vmatmul.mubr.f32.gmra.mxu0 %v845
      %v921 = vpop.f32.mrf.mxu0
      %v922 = vadd.f32 %v836, %v921
      %v923 = vpop.f32.mrf.mxu0
      %924 = vdwg.mxu0
      %vm925 = vcmp.gt.f32.partialorder %v922, 0.0
      %v926 = vmul.f32 %v922, 0.01
      %v927 = vsel %vm925, %v922, %v926
      %v928 = vld [vmem:[%s5] sm:$0xf]
      %v929 = vld [vmem:[%s5 + $0x4] sm:$0xf]
      %v930 = vld [vmem:[%s5 + $0x8] sm:$0xf]
      %v931 = vld [vmem:[%s5 + $0xc] sm:$0xf]
      %v932 = vld [vmem:[%s5 + $0x10] sm:$0xf]
      %v933 = vld [vmem:[%s5 + $0x14] sm:$0xf]
      %v934 = vld [vmem:[%s5 + $0x18] sm:$0x1]
      %v935 = vunpack.c.l.bf16 %v928
      %v936 = vunpack.c.l.bf16 %v929
      %v937 = vunpack.c.l.bf16 %v930
      %v938 = vunpack.c.l.bf16 %v931
      %v939 = vunpack.c.l.bf16 %v932
      %v940 = vunpack.c.l.bf16 %v933
      %v941 = vunpack.c.l.bf16 %v934
      %v942 = vld [vmem:[%s6] sm:$0x1]
      %v944 = vlaneseq
      %v945 = vshrl.u32 %v944, 7
      %v946 = vsub.s32 0, %v945
      %v947 = vrot.slane %v942, %v946
      %vm949 = vcmask 408576
      %v951 = vsel %vm949, %v927, 0
      %v954 = vsel %vm762, %v941, 0
      %956 = vmatprep.subr.mxu0 0.0
      %957 = vmatpush1.msra.mxu0 0.0
      %958 = vmatprep.subr.mxu0 0.0
      %959 = vmatpush1.msra.mxu0 0.0
      %960 = vmatprep.subr.mxu0 0.0
      %961 = vmatpush1.msra.mxu0 0.0
      %962 = vmatprep.subr.mxu0 0.0
      %963 = vmatpush1.msra.mxu0 0.0
      %964 = vmatprep.subr.mxu0 0.0
      %965 = vmatpush1.msra.mxu0 0.0
      %966 = vmatprep.subr.mxu0 0.0
      %967 = vmatpush1.msra.mxu0 0.0
      %968 = vmatprep.subr.mxu0 0.0
      %969 = vmatpush1.msra.mxu0 0.0
      %970 = vmatprep.subr.mxu0 0.0
      %971 = vmatpush1.msra.mxu0 0.0
      %972 = vmatprep.subr.mxu0 0.0
      %973 = vmatpush1.msra.mxu0 0.0
      %974 = vmatprep.subr.mxu0 0.0
      %975 = vmatpush1.msra.mxu0 %v954
      %976 = vmatprep.subr.mxu0 0.0
      %977 = vmatpush1.msra.mxu0 %v940
      %978 = vmatprep.subr.mxu0 0.0
      %979 = vmatpush1.msra.mxu0 %v939
      %980 = vmatprep.subr.mxu0 0.0
      %981 = vmatpush1.msra.mxu0 %v938
      %982 = vmatprep.subr.mxu0 0.0
      %983 = vmatpush1.msra.mxu0 %v937
      %984 = vmatprep.subr.mxu0 0.0
      %985 = vmatpush1.msra.mxu0 %v936
      %986 = vmatprep.subr.mxu0 0.0
      %987 = vmatpush1.msra.mxu0 %v935
      %988 = vmatprep.subr.mxu0 0.0
      %989 = vmatpush2.msra.mxu0 0.0
      %990 = vmatprep.subr.mxu0 0.0
      %991 = vmatpush2.msra.mxu0 0.0
      %992 = vmatprep.subr.mxu0 0.0
      %993 = vmatpush2.msra.mxu0 0.0
      %994 = vmatprep.subr.mxu0 0.0
      %995 = vmatpush2.msra.mxu0 0.0
      %996 = vmatprep.subr.mxu0 0.0
      %997 = vmatpush2.msra.mxu0 0.0
      %998 = vmatprep.subr.mxu0 0.0
      %999 = vmatpush2.msra.mxu0 0.0
      %1000 = vmatprep.subr.mxu0 0.0
      %1001 = vmatpush2.msra.mxu0 0.0
      %1002 = vmatprep.subr.mxu0 0.0
      %1003 = vmatpush2.msra.mxu0 0.0
      %1004 = vmatprep.subr.mxu0 0.0
      %1005 = vmatpush2.msra.mxu0 0.0
      %1006 = vmatprep.subr.mxu0 0.0
      %1007 = vmatpush2.msra.mxu0 0.0
      %1008 = vmatprep.subr.mxu0 0.0
      %1009 = vmatpush2.msra.mxu0 0.0
      %1010 = vmatprep.subr.mxu0 0.0
      %1011 = vmatpush2.msra.mxu0 0.0
      %1012 = vmatprep.subr.mxu0 0.0
      %1013 = vmatpush2.msra.mxu0 0.0
      %1014 = vmatprep.subr.mxu0 0.0
      %1015 = vmatpush2.msra.mxu0 0.0
      %1016 = vmatprep.subr.mxu0 0.0
      %1017 = vmatpush2.msra.mxu0 0.0
      %1018 = vmatprep.subr.mxu0 0.0
      %1019 = vmatpush2.msra.mxu0 0.0
      %1020 = vmatprep.mubr.f32.mxu0 0.0
      %1021 = vmatmul.mubr.f32.gmra.mxu0 %v951
      %v1022 = vpop.f32.mrf.mxu0
      %v1023 = vadd.f32 %v947, %v1022
      %v1024 = vpop.f32.mrf.mxu0
      %1025 = vdwg.mxu0
      %vm1026 = vcmask 74752
      %1027 = vst.msk [vmem:[#allocation3] sm:$0x3] %vm1026, %v1023
    $region37: #{tpu_custom_call.1} parent=1 // pred_fallthru
      _
    // Predicated region
    $region38: #{tpu_custom_call.1} parent=1 // pred_check
      _
    $region39: #{tpu_custom_call.1} parent=1 // pred_check_branch
      %1029 = sbr.rel (0) target = $region41
    $region40: #{tpu_custom_call.1} parent=1 // pred_region
      %s1031 = ssub.s32 32, 32
      %1032 = vsyncadd [#allocation4], %s1031
      %s1034 = sshll.u32 [#allocation3], 4
      %s1035 = int_to_ptr.vmem [resolvable:$true] %s1034
      %1037 = dma.vmem_to_hbm [thread:$0]  %s1035, 32, %s7, [#allocation4]
    $region41: #{tpu_custom_call.1} parent=1 // pred_fallthru
      _
    // Predicated region
    $region42: #{tpu_custom_call.1} parent=1 // pred_check
      _
    $region43: #{tpu_custom_call.1} parent=1 // pred_check_branch
      %1039 = sbr.rel (0) target = $region45
    $region44: #{tpu_custom_call.1} parent=1 // pred_region
      %1040 = dma.done [#allocation4], 32
    $region45: #{tpu_custom_call.1} parent=1 // pred_fallthru
      _
    %1041 = vsyncpa [#allocation4], 1

</llo_original>
